<compile_context>
chip_gen: v7x
topology: tpu7x:2x2x1
jax: 0.10.0
libtpu: 0.0.40
codegen_flags: <defaults>
</compile_context>

<pallas_src>
import functools

import jax
import jax.numpy as jnp
from jax.experimental import pallas as pl
from jax.experimental.pallas import tpu as pltpu


def _affine_lmk_kernel(lmk_ref, aff_ref, out_ref, *, inverse):
    # lmk_ref : VMEM (TB, W)  interleaved x0,y0,x1,y1,...
    # aff_ref : VMEM (TB, 6)  [a00, a01, a10, a11, tx, ty] per batch row
    # out_ref : VMEM (TB, W)
    a00 = aff_ref[:, 0:1]
    a01 = aff_ref[:, 1:2]
    a10 = aff_ref[:, 2:3]
    a11 = aff_ref[:, 3:4]
    tx = aff_ref[:, 4:5]
    ty = aff_ref[:, 5:6]

    if inverse:
        det = a00 * a11 - a01 * a10
        # Exact divide (not pl.reciprocal(approx=True)): keeps 1e-5/1e-4 tols.
        # On a ragged last batch block, out-of-bounds rows may hold garbage and
        # 1/det can be inf/NaN there -- harmless on TPU (rows are discarded by
        # Pallas boundary masking, no FP traps), and they never feed valid rows.
        inv_det = 1.0 / det
        i00 = a11 * inv_det
        i01 = -a01 * inv_det
        i10 = -a10 * inv_det
        i11 = a00 * inv_det
        # t_new = (-t) @ Ainv^T  =>  t_new[j] = -(tx*Ainv[j,0] + ty*Ainv[j,1])
        ntx = -(tx * i00 + ty * i01)
        nty = -(tx * i10 + ty * i11)
        a00, a01, a10, a11, tx, ty = i00, i01, i10, i11, ntx, nty

    v = lmk_ref[...]                              # (TB, W) interleaved
    width = v.shape[1]
    v_next = pltpu.roll(v, width - 1, axis=1)     # lane i sees v[i+1]   (XLU)
    v_prev = pltpu.roll(v, 1, axis=1)             # lane i sees v[i-1]   (XLU)

    # Lane-tile offsets are multiples of 128 (even), so local parity == global
    # parity.  twoN is even, so the wrapped lanes produced by the rolls are
    # never selected by the parity masks below -- no lane padding required.
    lane = jax.lax.broadcasted_iota(jnp.int32, v.shape, 1)
    is_x = (lane & 1) == 0

    # Parity-select each operand once (materializes the (TB,1)->(TB,W)
    # broadcasts a single time), then one fused evaluation over the tile.
    c_self = jnp.where(is_x, a00, a11)
    c_other = jnp.where(is_x, a10, a01)
    t_sel = jnp.where(is_x, tx, ty)
    v_other = jnp.where(is_x, v_next, v_prev)

    out_ref[...] = c_self * v + c_other * v_other + t_sel


def _round_up(x, m):
    return ((x + m - 1) // m) * m


def affine_landmark_transformation(lmk_tensor, affine_tensor, inverse=False):
    """Pallas equivalent of AffineLandmarkTransformation.forward.

    lmk_tensor   : (B, N, 2) (or any shape reshapeable to (B, -1, 2)) float32
    affine_tensor: (B, 6) float32
    returns      : (B, N, 2) float32
    """
    B = affine_tensor.shape[0]
    lmk = jnp.asarray(lmk_tensor)
    dtype = lmk.dtype

    # Native interleaved lane layout -- a pure view, no transpose / no copy.
    v = lmk.reshape(B, -1)                        # mirrors .view(B, -1, 2)
    twoN = v.shape[1]
    assert twoN % 2 == 0, "landmark tensor must be reshapeable to (B, N, 2)"
    N = twoN // 2
    aff = affine_tensor.astype(dtype)

    # ---- batch (sublane) tiling --------------------------------------------
    # Multiple of 8 unless it equals the full batch.  Aim for >=2 grid blocks
    # when possible (v7x has 2 TensorCores), cap at 512 rows so the
    # double-buffered in+out footprint stays well under v7x's 64 MiB VMEM.
    TB_MAX = 512
    if B <= 8:
        tb = B                                    # block dim == full array dim
    else:
        tb = min(TB_MAX, _round_up(-(-B // 2), 8))
    n_b = pl.cdiv(B, tb)

    # ---- lane tiling ---------------------------------------------------------
    # Full twoN if it fits (block dim == full array dim is legal, masked vst on
    # non-128-multiple widths is far cheaper than an extra full-array copy);
    # otherwise a multiple-of-128 tile so (x,y) pairs never straddle a tile.
    LT_MAX = 2048
    lt = twoN if twoN <= LT_MAX else LT_MAX
    n_l = pl.cdiv(twoN, lt)

    kernel = functools.partial(_affine_lmk_kernel, inverse=bool(inverse))

    out = pl.pallas_call(
        kernel,
        out_shape=jax.ShapeDtypeStruct((B, twoN), dtype),
        grid=(n_b, n_l),
        in_specs=[
            pl.BlockSpec((tb, lt), lambda b, l: (b, l)),
            pl.BlockSpec((tb, 6), lambda b, l: (b, 0)),
        ],
        out_specs=pl.BlockSpec((tb, lt), lambda b, l: (b, l)),
        compiler_params=pltpu.CompilerParams(
            dimension_semantics=("parallel", "parallel"),
            vmem_limit_bytes=32 * 1024 * 1024,
        ),
    )(v, aff)

    return out.reshape(B, N, 2)


def _reference(lmk, affine, inverse=False):
    """Pure-JAX reference matching the PyTorch module exactly."""
    B = affine.shape[0]
    A = jnp.stack([affine[:, :2], affine[:, 2:4]], axis=1)   # (B, 2, 2)
    t = affine[:, 4:6]
    if inverse:
        A = jnp.linalg.inv(A)
        t = jnp.einsum("bk,bjk->bj", -t, A)                  # (-t) @ A^T
    out = jnp.einsum("bnk,bkj->bnj", lmk.reshape(B, -1, 2), A)
    return out + t[:, None, :]


if __name__ == "__main__":
    key = jax.random.PRNGKey(0)
    k_lmk, k_aff, k_lmk2, k_aff2 = jax.random.split(key, 4)

    # Small case: single block, block dims == full array dims.
    B, N = 2, 8
    lmk = jax.random.normal(k_lmk, (B, N, 2), dtype=jnp.float32)
    base = jnp.tile(jnp.array([1.0, 0.0, 0.0, 1.0, 0.5, -0.25],
                              dtype=jnp.float32), (B, 1))
    affine = base + 0.1 * jax.random.normal(k_aff, (B, 6), dtype=jnp.float32)

    out_fwd = jax.block_until_ready(
        affine_landmark_transformation(lmk, affine, inverse=False))
    out_inv = jax.block_until_ready(
        affine_landmark_transformation(lmk, affine, inverse=True))
    assert out_fwd.shape == (B, N, 2) and out_inv.shape == (B, N, 2)
    assert jnp.allclose(out_fwd, _reference(lmk, affine, False),
                        atol=1e-5, rtol=1e-5)
    assert jnp.allclose(out_inv, _reference(lmk, affine, True),
                        atol=1e-4, rtol=1e-4)

    # Larger case: multi-block batch grid with a ragged last block
    # (B=20, tb=16 -> grid of 2) and a non-128-multiple lane width (2N=136).
    B2, N2 = 20, 68
    lmk2 = jax.random.normal(k_lmk2, (B2, N2, 2), dtype=jnp.float32)
    base2 = jnp.tile(jnp.array([1.0, 0.0, 0.0, 1.0, 0.5, -0.25],
                               dtype=jnp.float32), (B2, 1))
    affine2 = base2 + 0.1 * jax.random.normal(k_aff2, (B2, 6), dtype=jnp.float32)

    out2_fwd = jax.block_until_ready(
        affine_landmark_transformation(lmk2, affine2, inverse=False))
    out2_inv = jax.block_until_ready(
        affine_landmark_transformation(lmk2, affine2, inverse=True))
    assert jnp.allclose(out2_fwd, _reference(lmk2, affine2, False),
                        atol=1e-5, rtol=1e-5)
    assert jnp.allclose(out2_inv, _reference(lmk2, affine2, True),
                        atol=1e-4, rtol=1e-4)

    print("KERNEL_OK")
</pallas_src>

<mosaic_0001>
module attributes {stable_mosaic.version = 11 : i64} {
  func.func @_affine_lmk_kernel(%arg0: i32, %arg1: i32, %arg2: memref<2x16xf32, #tpu.memory_space<vmem>>, %arg3: memref<2x6xf32, #tpu.memory_space<vmem>>, %arg4: memref<2x16xf32, #tpu.memory_space<vmem>>) attributes {dimension_semantics = [#tpu.dimension_semantics<parallel>, #tpu.dimension_semantics<parallel>], iteration_bounds = array<i64: 1, 1>, scalar_prefetch = 0 : i64, scratch_operands = 0 : i64, tpu.core_type = #tpu.core_type<tc>, window_params = [{transform_indices = @transform_0, window_bounds = array<i64: 2, 16>}, {transform_indices = @transform_1, window_bounds = array<i64: 2, 6>}, {transform_indices = @transform_2, window_bounds = array<i64: 2, 16>}]} {
    %c0 = arith.constant 0 : index
    %c0_0 = arith.constant 0 : index
    %0 = vector.load %arg3[%c0, %c0_0] : memref<2x6xf32, #tpu.memory_space<vmem>>, vector<2x1xf32>
    %c0_1 = arith.constant 0 : index
    %c1 = arith.constant 1 : index
    %1 = vector.load %arg3[%c0_1, %c1] : memref<2x6xf32, #tpu.memory_space<vmem>>, vector<2x1xf32>
    %c0_2 = arith.constant 0 : index
    %c2 = arith.constant 2 : index
    %2 = vector.load %arg3[%c0_2, %c2] : memref<2x6xf32, #tpu.memory_space<vmem>>, vector<2x1xf32>
    %c0_3 = arith.constant 0 : index
    %c3 = arith.constant 3 : index
    %3 = vector.load %arg3[%c0_3, %c3] : memref<2x6xf32, #tpu.memory_space<vmem>>, vector<2x1xf32>
    %c0_4 = arith.constant 0 : index
    %c4 = arith.constant 4 : index
    %4 = vector.load %arg3[%c0_4, %c4] : memref<2x6xf32, #tpu.memory_space<vmem>>, vector<2x1xf32>
    %c0_5 = arith.constant 0 : index
    %c5 = arith.constant 5 : index
    %5 = vector.load %arg3[%c0_5, %c5] : memref<2x6xf32, #tpu.memory_space<vmem>>, vector<2x1xf32>
    %c0_6 = arith.constant 0 : index
    %c0_7 = arith.constant 0 : index
    %6 = vector.load %arg2[%c0_6, %c0_7] : memref<2x16xf32, #tpu.memory_space<vmem>>, vector<2x16xf32>
    %c15_i32 = arith.constant 15 : i32
    %7 = tpu.dynamic_rotate %6 by %c15_i32 dim 1 : vector<2x16xf32>, i32 -> vector<2x16xf32>
    %c1_i32 = arith.constant 1 : i32
    %8 = tpu.dynamic_rotate %6 by %c1_i32 dim 1 : vector<2x16xf32>, i32 -> vector<2x16xf32>
    %9 = tpu.iota {dimensions = array<i32: 1>} : vector<2x16xi32>
    %c1_i32_8 = arith.constant 1 : i32
    %10 = vector.broadcast %c1_i32_8 : i32 to vector<2x16xi32>
    %11 = arith.andi %9, %10 : vector<2x16xi32>
    %c0_i32 = arith.constant 0 : i32
    %12 = vector.broadcast %c0_i32 : i32 to vector<2x16xi32>
    %13 = arith.cmpi eq, %11, %12 : vector<2x16xi32>
    %14 = vector.shape_cast %0 : vector<2x1xf32> to vector<2x1xf32>
    %15 = vector.broadcast %14 : vector<2x1xf32> to vector<2x16xf32>
    %16 = vector.shape_cast %3 : vector<2x1xf32> to vector<2x1xf32>
    %17 = vector.broadcast %16 : vector<2x1xf32> to vector<2x16xf32>
    %18 = arith.select %13, %15, %17 : vector<2x16xi1>, vector<2x16xf32>
    %19 = vector.shape_cast %2 : vector<2x1xf32> to vector<2x1xf32>
    %20 = vector.broadcast %19 : vector<2x1xf32> to vector<2x16xf32>
    %21 = vector.shape_cast %1 : vector<2x1xf32> to vector<2x1xf32>
    %22 = vector.broadcast %21 : vector<2x1xf32> to vector<2x16xf32>
    %23 = arith.select %13, %20, %22 : vector<2x16xi1>, vector<2x16xf32>
    %24 = vector.shape_cast %4 : vector<2x1xf32> to vector<2x1xf32>
    %25 = vector.broadcast %24 : vector<2x1xf32> to vector<2x16xf32>
    %26 = vector.shape_cast %5 : vector<2x1xf32> to vector<2x1xf32>
    %27 = vector.broadcast %26 : vector<2x1xf32> to vector<2x16xf32>
    %28 = arith.select %13, %25, %27 : vector<2x16xi1>, vector<2x16xf32>
    %29 = arith.select %13, %7, %8 : vector<2x16xi1>, vector<2x16xf32>
    %30 = arith.mulf %18, %6 : vector<2x16xf32>
    %31 = arith.mulf %23, %29 : vector<2x16xf32>
    %32 = arith.addf %30, %31 : vector<2x16xf32>
    %33 = arith.addf %32, %28 : vector<2x16xf32>
    %c0_9 = arith.constant 0 : index
    %c0_10 = arith.constant 0 : index
    %34 = vector.load %arg4[%c0_9, %c0_10] : memref<2x16xf32, #tpu.memory_space<vmem>>, vector<2x16xf32>
    tpu.vector_store %arg4[%c0_9, %c0_10], %33 {strides = array<i32>} : memref<2x16xf32, #tpu.memory_space<vmem>>, vector<2x16xf32>,
    return
  }
  func.func @transform_0(%arg0: i32, %arg1: i32) -> (i32, i32) {
    %c0_i32 = arith.constant 0 : i32
    return %arg0, %arg1 : i32, i32
  }
  func.func @transform_1(%arg0: i32, %arg1: i32) -> (i32, i32) {
    %c0_i32 = arith.constant 0 : i32
    %c0_i32_0 = arith.constant 0 : i32
    return %arg0, %c0_i32 : i32, i32
  }
  func.func @transform_2(%arg0: i32, %arg1: i32) -> (i32, i32) {
    %c0_i32 = arith.constant 0 : i32
    return %arg0, %arg1 : i32, i32
  }
}

</mosaic_0001>

<llo_original>
// kernel: tpu_custom_call.1
$region0: #{tpu_custom_call.1}
  #allocation0 [shape = 'u32[]', space=smem, size = 0x4, offset = 0x4, fixed_abs, tag = 'smem constant byte address 0x4 - core index']
  #allocation1 [shape = 'u32[144,128]{1,0:T(1,128)}', space=vmem, size = 0x12000, scoped, tag = 'internal scratch']
  %s0 = inlined_call_operand.hbm [shape: f32[2,16], index: 0, kind: input, shape index: {}]
  %s1 = inlined_call_operand.vmem [shape: f32[2,6], index: 1, kind: input, shape index: {}]
  %s2 = inlined_call_operand.hbm [shape: f32[2,16], index: 2, kind: output, shape index: {}]
  %s3 = sld [smem:[#allocation0]]
  $region22: #{tpu_custom_call.1} parent=0
    _
  %s5 = ssub.s32 1, %s3
  %s6 = scalar_select 0, %s5, %s3
  $region1: #{tpu_custom_call.1} parent=0
    #allocation2 [shape = 'u8[1024]{0}', space=vmem, size = 0x400, scoped, tag = 'input window, operand 0, single buffered']
    #allocation3 [shape = 's32[1]{0}', space=sflag, size = 0x4, scoped, tag = 'scoped memory for tpu_custom_call.1']
    #allocation4 [shape = 's32[1]{0}', space=sflag, size = 0x4, scoped, tag = 'scoped memory for tpu_custom_call.1']
    #allocation5 [shape = 'u8[1024]{0}', space=vmem, size = 0x400, scoped, tag = 'output window, operand 0, single buffered']
    %7 = vsyncpa [#allocation3], 0
    %8 = vsyncpa [#allocation4], 0
    // Predicated region
    $region2: #{tpu_custom_call.1} parent=1 // pred_check
      _
    $region3: #{tpu_custom_call.1} parent=1 // pred_check_branch
      %10 = sbr.rel (0) target = $region5
    $region4: #{tpu_custom_call.1} parent=1 // pred_region
      %s12 = ssub.s32 32, 32
      %13 = vsyncadd [#allocation3], %s12
      %s15 = sshll.u32 [#allocation2], 4
      %s16 = int_to_ptr.vmem [resolvable:$true] %s15
      %18 = dma.hbm_to_vmem [thread:$0]  %s0, 32, %s16, [#allocation3]
    $region5: #{tpu_custom_call.1} parent=1 // pred_fallthru
      _
    // Predicated region
    $region6: #{tpu_custom_call.1} parent=1 // pred_check
      _
    $region7: #{tpu_custom_call.1} parent=1 // pred_check_branch
      %20 = sbr.rel (0) target = $region9
    $region8: #{tpu_custom_call.1} parent=1 // pred_region
      _
    $region9: #{tpu_custom_call.1} parent=1 // pred_fallthru
      _
    // Predicated region
    $region10: #{tpu_custom_call.1} parent=1 // pred_check
      _
    $region11: #{tpu_custom_call.1} parent=1 // pred_check_branch
      %22 = sbr.rel (0) target = $region13
    $region12: #{tpu_custom_call.1} parent=1 // pred_region
      %23 = dma.done [#allocation3], 32
    $region13: #{tpu_custom_call.1} parent=1 // pred_fallthru
      _
    %v24 = vld [vmem:[%s1] sm:$0x3]
    %v25 = vld [vmem:[#allocation2] sm:$0x3]
    %vm26 = vcmask 1047680
    %27 = vrot.lane.b32.xlu0 %v25, 16
    %v28 = vpop.permute.xlu0 %27
    %v29 = vsel %vm26, %v28, %v25
    %30 = vrot.lane.b32.xlu0 %v29, 16
    %v31 = vpop.permute.xlu0 %30
    %v32 = vsel %vm26, %v31, %v25
    %v33 = vlaneseq
    %v34 = vand.u32 %v33, 127
    %v35 = vand.u32 %v34, 1
    %vm36 = vcmp.eq.s32.totalorder %v35, 0
    %38 = vset.pattern.permute.xlu0 0
    %39 = vperm.xlu0 %38, %v24
    %v40 = vpop.permute.xlu0 %39
    %42 = vset.pattern.permute.xlu0 3
    %43 = vperm.xlu0 %42, %v24
    %v44 = vpop.permute.xlu0 %43
    %v46 = vsel %vm36, %v40, %v44
    %47 = vset.pattern.permute.xlu0 2
    %48 = vperm.xlu0 %47, %v24
    %v49 = vpop.permute.xlu0 %48
    %51 = vset.pattern.permute.xlu0 1
    %52 = vperm.xlu0 %51, %v24
    %v53 = vpop.permute.xlu0 %52
    %v55 = vsel %vm36, %v49, %v53
    %56 = vset.pattern.permute.xlu0 4
    %57 = vperm.xlu0 %56, %v24
    %v58 = vpop.permute.xlu0 %57
    %60 = vset.pattern.permute.xlu0 5
    %61 = vperm.xlu0 %60, %v24
    %v62 = vpop.permute.xlu0 %61
    %v64 = vsel %vm36, %v58, %v62
    %66 = vrot.lane.b32.xlu0 %v32, 127
    %v67 = vpop.permute.xlu0 %66
    %69 = vrot.lane.b32.xlu0 %v32, 113
    %v70 = vpop.permute.xlu0 %69
    %v72 = vsel %vm36, %v67, %v70
    %v73 = vmul.f32 %v46, %v25
    %v74 = vmul.f32 %v55, %v72
    %v75 = vadd.f32 %v73, %v74
    %v76 = vadd.f32 %v75, %v64
    %vm77 = vcmask 123904
    %78 = vst.msk [vmem:[#allocation5] sm:$0x3] %vm77, %v76
    // Predicated region
    $region14: #{tpu_custom_call.1} parent=1 // pred_check
      _
    $region15: #{tpu_custom_call.1} parent=1 // pred_check_branch
      %80 = sbr.rel (0) target = $region17
    $region16: #{tpu_custom_call.1} parent=1 // pred_region
      %s82 = ssub.s32 32, 32
      %83 = vsyncadd [#allocation4], %s82
      %s85 = sshll.u32 [#allocation5], 4
      %s86 = int_to_ptr.vmem [resolvable:$true] %s85
      %88 = dma.vmem_to_hbm [thread:$0]  %s86, 32, %s2, [#allocation4]
    $region17: #{tpu_custom_call.1} parent=1 // pred_fallthru
      _
    // Predicated region
    $region18: #{tpu_custom_call.1} parent=1 // pred_check
      _
    $region19: #{tpu_custom_call.1} parent=1 // pred_check_branch
      %90 = sbr.rel (0) target = $region21
    $region20: #{tpu_custom_call.1} parent=1 // pred_region
      %91 = dma.done [#allocation4], 32
    $region21: #{tpu_custom_call.1} parent=1 // pred_fallthru
      _
    %92 = vsyncpa [#allocation3], 1
    %93 = vsyncpa [#allocation4], 1

</llo_original>
